<compile_context>
chip_gen: v7x
topology: tpu7x:2x2x1
jax: 0.10.0
libtpu: 0.0.40
codegen_flags: <defaults>
</compile_context>

<pallas_src>
import functools

import jax
import jax.numpy as jnp
from jax.experimental import pallas as pl
from jax.experimental.pallas import tpu as pltpu


_MAX_LANES = 4096          # target pixel-tile width (lanes); multiple of 128
_SMALL_IMAGE_LANES = 1024  # below this, fold batch into the lane axis


# ----------------------------- kernels --------------------------------------


def _upconv_mxu_kernel(w_ref, b_ref, x_ref, o_ref):
    """Stacked-tap matmul: (4*cout, cin) @ (cin, P), one full-block store.

    w_ref : (4*cout, cin)  VMEM  (row = (kh*2+kw)*cout + co)
    b_ref : (4*cout, 1)    VMEM  f32
    x_ref : (cin, P)       VMEM  (P lane-dense pixels)
    o_ref : (4*cout, P)    VMEM
    """
    acc = jnp.dot(w_ref[...], x_ref[...], preferred_element_type=jnp.float32)
    o_ref[...] = (acc + b_ref[...]).astype(o_ref.dtype)


def _upconv_vpu_kernel(w_ref, b_ref, x_ref, o_ref, *, cin):
    """Tiny-channel path: cin full-height FMAs on a (4*cout, P) accumulator."""
    x = x_ref[...].astype(jnp.float32)          # (cin, P)
    w = w_ref[...].astype(jnp.float32)          # (4*cout, cin)
    acc = w[:, 0:1] * x[0:1, :]                 # (4*cout, P)
    for ci in range(1, cin):
        acc = acc + w[:, ci:ci + 1] * x[ci:ci + 1, :]
    o_ref[...] = (acc + b_ref[...]).astype(o_ref.dtype)


# ----------------------------- wrapper ---------------------------------------


def _vmem_capacity_bytes():
    try:
        return int(pltpu.get_tpu_info().vmem_capacity_bytes)
    except Exception:
        return 64 * 1024 * 1024   # v7x per-TensorCore value: safe lower bound


def _pick_pixel_tile(n_lanes, cin, cout, x_itm, o_itm, w_bytes):
    """Pixel-tile width P (lanes), derived from a per-generation VMEM budget."""
    capacity = _vmem_capacity_bytes()
    budget = min(int(0.6 * capacity), 48 * 1024 * 1024) - w_bytes - (1 << 20)
    per_lane = 2 * (cin * x_itm + 4 * cout * o_itm)   # double-buffered in + out
    p = max(budget // max(per_lane, 1), 128)
    p = min(p, _MAX_LANES)
    p = (p // 128) * 128
    if p >= n_lanes:
        return n_lanes            # single tile: full minor dim is always layout-legal
    return max(p, 128)


@functools.partial(jax.jit, static_argnames=("out_dtype",))
def upconv_forward(x_nchw, weight, bias, *, out_dtype=None):
    """ConvTranspose2d(channels, out_channels, 2, stride=2, padding=0).

    x_nchw : (B, Cin, H, W)       (bf16 inputs supported; halves input HBM)
    weight : (Cin, Cout, 2, 2)    (PyTorch ConvTranspose2d layout)
    bias   : (Cout,)
    returns: (B, Cout, 2H, 2W) in `out_dtype` (default: dtype of x).
    """
    B, cin, H, W = x_nchw.shape
    cout = weight.shape[1]
    out_dtype = jnp.dtype(out_dtype) if out_dtype is not None else x_nchw.dtype

    use_vpu = (cin <= 16) and (cout <= 16)

    # Stacked-tap weight: (Cin, Cout, 2, 2) -> rows (kh, kw, co), cols ci.
    w2 = jnp.transpose(weight, (2, 3, 1, 0)).reshape(4 * cout, cin)
    w2 = w2.astype(jnp.float32 if use_vpu else x_nchw.dtype)
    b2 = jnp.tile(bias.astype(jnp.float32), 4).reshape(4 * cout, 1)

    x_itm = x_nchw.dtype.itemsize
    o_itm = out_dtype.itemsize
    w_bytes = int(w2.size) * w2.dtype.itemsize + 4 * cout * 4

    fold_batch = (B > 1) and (H * W < _SMALL_IMAGE_LANES)

    if fold_batch:
        # One tiny transpose over the (small) input puts every image's pixels on a
        # single lane axis, so output stores stay >=128 lanes wide.
        xk = jnp.transpose(x_nchw, (1, 0, 2, 3)).reshape(cin, B * H * W)
        n_lanes = B * H * W
        P = _pick_pixel_tile(n_lanes, cin, cout, x_itm, o_itm, w_bytes)
        grid = (pl.cdiv(n_lanes, P),)
        in_specs = [
            pl.BlockSpec((4 * cout, cin), lambda i: (0, 0)),
            pl.BlockSpec((4 * cout, 1), lambda i: (0, 0)),
            pl.BlockSpec((cin, P), lambda i: (0, i)),
        ]
        out_spec = pl.BlockSpec((4 * cout, P), lambda i: (0, i))
        out_shape = jax.ShapeDtypeStruct((4 * cout, n_lanes), out_dtype)
        dims = ("parallel",)
    else:
        xk = x_nchw.reshape(B, cin, H * W)   # metadata-only: pixels on the lane axis
        n_lanes = H * W
        P = _pick_pixel_tile(n_lanes, cin, cout, x_itm, o_itm, w_bytes)
        grid = (B, pl.cdiv(n_lanes, P))
        in_specs = [
            pl.BlockSpec((4 * cout, cin), lambda b, i: (0, 0)),
            pl.BlockSpec((4 * cout, 1), lambda b, i: (0, 0)),
            pl.BlockSpec((None, cin, P), lambda b, i: (b, 0, i)),
        ]
        out_spec = pl.BlockSpec((None, 4 * cout, P), lambda b, i: (b, 0, i))
        out_shape = jax.ShapeDtypeStruct((B, 4 * cout, n_lanes), out_dtype)
        dims = ("parallel", "parallel")

    kernel = (functools.partial(_upconv_vpu_kernel, cin=cin)
              if use_vpu else _upconv_mxu_kernel)

    # VMEM budget: double-buffered in/out tiles + resident weight/bias + slack.
    need = 2 * cin * P * x_itm + 2 * 4 * cout * P * o_itm + w_bytes + (1 << 20)
    vmem_limit = None
    if need > 12 * 1024 * 1024:
        vmem_limit = int(min(need + (2 << 20), int(0.9 * _vmem_capacity_bytes())))

    flops = 2 * B * H * W * cin * 4 * cout + B * H * W * 4 * cout
    bytes_accessed = (B * cin * H * W * x_itm + w_bytes
                      + B * 4 * cout * H * W * o_itm)

    y = pl.pallas_call(
        kernel,
        out_shape=out_shape,
        grid=grid,
        in_specs=in_specs,
        out_specs=out_spec,
        compiler_params=pltpu.CompilerParams(
            dimension_semantics=dims,
            vmem_limit_bytes=vmem_limit,
        ),
        cost_estimate=pl.CostEstimate(
            flops=int(flops), transcendentals=0,
            bytes_accessed=int(bytes_accessed)),
    )(w2, b2, xk)

    # One XLA pass interleaves the 2x2 taps into the upsampled NCHW grid.
    if fold_batch:
        y = y.reshape(2, 2, cout, B, H, W)            # (kh, kw, co, b, h, w)
        y = jnp.transpose(y, (3, 2, 4, 0, 5, 1))      # (b, co, h, kh, w, kw)
    else:
        y = y.reshape(B, 2, 2, cout, H, W)            # (b, kh, kw, co, h, w)
        y = jnp.transpose(y, (0, 3, 4, 1, 5, 2))      # (b, co, h, kh, w, kw)
    return y.reshape(B, cout, 2 * H, 2 * W)


# ----------------------------- reference & demo -------------------------------


def _reference_upconv(x, weight, bias):
    # Pure-JAX reference of ConvTranspose2d(k=2, s=2, p=0), NCHW, full f32.
    B, cin, H, W = x.shape
    cout = weight.shape[1]
    y = jnp.einsum("nchw,cokl->nohkwl",
                   x.astype(jnp.float32), weight.astype(jnp.float32),
                   precision=jax.lax.Precision.HIGHEST)     # (B,Cout,H,kh,W,kw)
    y = y.reshape(B, cout, 2 * H, 2 * W)
    return y + bias.astype(jnp.float32)[None, :, None, None]


if __name__ == "__main__":
    key = jax.random.PRNGKey(0)
    ks = jax.random.split(key, 9)

    # --- config A: module defaults, small shapes (batch-folded, VPU path) -----
    B, C, H, W = 2, 4, 16, 16
    x = jax.random.normal(ks[0], (B, C, H, W), dtype=jnp.float32)
    w = jax.random.normal(ks[1], (C, C, 2, 2), dtype=jnp.float32) * 0.1
    b = jax.random.normal(ks[2], (C,), dtype=jnp.float32) * 0.1
    out = jax.block_until_ready(upconv_forward(x, w, b))
    ref = _reference_upconv(x, w, b)
    assert out.shape == (B, C, 2 * H, 2 * W), out.shape
    assert jnp.allclose(out, ref, atol=1e-5, rtol=1e-5), "VPU path mismatch"

    # --- config B: larger channels, tiny image (batch-folded, stacked MXU) ----
    B2, C2, Co2, H2, W2 = 2, 128, 64, 8, 8
    x2 = jax.random.normal(ks[3], (B2, C2, H2, W2), dtype=jnp.float32)
    w2 = jax.random.normal(ks[4], (C2, Co2, 2, 2), dtype=jnp.float32) * 0.05
    b2 = jax.random.normal(ks[5], (Co2,), dtype=jnp.float32) * 0.1
    out2 = jax.block_until_ready(upconv_forward(x2, w2, b2))
    ref2 = _reference_upconv(x2, w2, b2)
    assert out2.shape == (B2, Co2, 2 * H2, 2 * W2), out2.shape
    assert jnp.allclose(out2, ref2, atol=5e-2, rtol=5e-2), "MXU path mismatch"

    # --- config B with bf16 activations/weights and bf16 output ---------------
    out3 = jax.block_until_ready(
        upconv_forward(x2.astype(jnp.bfloat16), w2.astype(jnp.bfloat16), b2,
                       out_dtype=jnp.bfloat16))
    assert out3.shape == (B2, Co2, 2 * H2, 2 * W2), out3.shape
    assert jnp.allclose(out3.astype(jnp.float32), ref2,
                        atol=2.5e-1, rtol=1e-1), "bf16 mismatch"

    # --- config C: bigger image, B=1 (non-folded path, multi-tile pixel grid) --
    B3, C3, H3, W3 = 1, 6, 64, 128
    x3 = jax.random.normal(ks[6], (B3, C3, H3, W3), dtype=jnp.float32)
    w3 = jax.random.normal(ks[7], (C3, C3, 2, 2), dtype=jnp.float32) * 0.1
    b3 = jax.random.normal(ks[8], (C3,), dtype=jnp.float32) * 0.1
    out4 = jax.block_until_ready(upconv_forward(x3, w3, b3))
    ref4 = _reference_upconv(x3, w3, b3)
    assert out4.shape == (B3, C3, 2 * H3, 2 * W3), out4.shape
    assert jnp.allclose(out4, ref4, atol=1e-5, rtol=1e-5), "non-folded mismatch"

    print("KERNEL_OK")
</pallas_src>

<mosaic_0001>
module attributes {stable_mosaic.version = 11 : i64} {
  func.func @_upconv_vpu_kernel(%arg0: i32, %arg1: memref<16x4xf32, #tpu.memory_space<vmem>>, %arg2: memref<16x1xf32, #tpu.memory_space<vmem>>, %arg3: memref<4x512xf32, #tpu.memory_space<vmem>>, %arg4: memref<16x512xf32, #tpu.memory_space<vmem>>) attributes {dimension_semantics = [#tpu.dimension_semantics<parallel>], iteration_bounds = array<i64: 1>, scalar_prefetch = 0 : i64, scratch_operands = 0 : i64, tpu.core_type = #tpu.core_type<tc>, window_params = [{pipeline_mode = #tpu.pipeline_mode<synchronous>, transform_indices = @transform_0, window_bounds = array<i64: 16, 4>}, {pipeline_mode = #tpu.pipeline_mode<synchronous>, transform_indices = @transform_1, window_bounds = array<i64: 16, 1>}, {transform_indices = @transform_2, window_bounds = array<i64: 4, 512>}, {transform_indices = @transform_3, window_bounds = array<i64: 16, 512>}]} {
    %c0 = arith.constant 0 : index
    %c0_0 = arith.constant 0 : index
    %0 = vector.load %arg3[%c0, %c0_0] : memref<4x512xf32, #tpu.memory_space<vmem>>, vector<4x512xf32>
    %c0_1 = arith.constant 0 : index
    %c0_2 = arith.constant 0 : index
    %1 = vector.load %arg1[%c0_1, %c0_2] : memref<16x4xf32, #tpu.memory_space<vmem>>, vector<16x4xf32>
    %2 = vector.extract_strided_slice %1 {offsets = [0, 0], sizes = [16, 1], strides = [1, 1]} : vector<16x4xf32> to vector<16x1xf32>
    %3 = vector.extract_strided_slice %0 {offsets = [0, 0], sizes = [1, 512], strides = [1, 1]} : vector<4x512xf32> to vector<1x512xf32>
    %4 = vector.broadcast %2 : vector<16x1xf32> to vector<16x512xf32>
    %5 = vector.broadcast %3 : vector<1x512xf32> to vector<16x512xf32>
    %6 = arith.mulf %4, %5 : vector<16x512xf32>
    %7 = vector.extract_strided_slice %1 {offsets = [0, 1], sizes = [16, 1], strides = [1, 1]} : vector<16x4xf32> to vector<16x1xf32>
    %8 = vector.extract_strided_slice %0 {offsets = [1, 0], sizes = [1, 512], strides = [1, 1]} : vector<4x512xf32> to vector<1x512xf32>
    %9 = vector.broadcast %7 : vector<16x1xf32> to vector<16x512xf32>
    %10 = vector.broadcast %8 : vector<1x512xf32> to vector<16x512xf32>
    %11 = arith.mulf %9, %10 : vector<16x512xf32>
    %12 = arith.addf %6, %11 : vector<16x512xf32>
    %13 = vector.extract_strided_slice %1 {offsets = [0, 2], sizes = [16, 1], strides = [1, 1]} : vector<16x4xf32> to vector<16x1xf32>
    %14 = vector.extract_strided_slice %0 {offsets = [2, 0], sizes = [1, 512], strides = [1, 1]} : vector<4x512xf32> to vector<1x512xf32>
    %15 = vector.broadcast %13 : vector<16x1xf32> to vector<16x512xf32>
    %16 = vector.broadcast %14 : vector<1x512xf32> to vector<16x512xf32>
    %17 = arith.mulf %15, %16 : vector<16x512xf32>
    %18 = arith.addf %12, %17 : vector<16x512xf32>
    %19 = vector.extract_strided_slice %1 {offsets = [0, 3], sizes = [16, 1], strides = [1, 1]} : vector<16x4xf32> to vector<16x1xf32>
    %20 = vector.extract_strided_slice %0 {offsets = [3, 0], sizes = [1, 512], strides = [1, 1]} : vector<4x512xf32> to vector<1x512xf32>
    %21 = vector.broadcast %19 : vector<16x1xf32> to vector<16x512xf32>
    %22 = vector.broadcast %20 : vector<1x512xf32> to vector<16x512xf32>
    %23 = arith.mulf %21, %22 : vector<16x512xf32>
    %24 = arith.addf %18, %23 : vector<16x512xf32>
    %c0_3 = arith.constant 0 : index
    %c0_4 = arith.constant 0 : index
    %25 = vector.load %arg2[%c0_3, %c0_4] : memref<16x1xf32, #tpu.memory_space<vmem>>, vector<16x1xf32>
    %26 = vector.broadcast %25 : vector<16x1xf32> to vector<16x512xf32>
    %27 = arith.addf %24, %26 : vector<16x512xf32>
    %c0_5 = arith.constant 0 : index
    %c0_6 = arith.constant 0 : index
    %28 = vector.load %arg4[%c0_5, %c0_6] : memref<16x512xf32, #tpu.memory_space<vmem>>, vector<16x512xf32>
    tpu.vector_store %arg4[%c0_5, %c0_6], %27 {strides = array<i32>} : memref<16x512xf32, #tpu.memory_space<vmem>>, vector<16x512xf32>,
    return
  }
  func.func @transform_0(%arg0: i32) -> (i32, i32) {
    %c0_i32 = arith.constant 0 : i32
    %c0_i32_0 = arith.constant 0 : i32
    %c0_i32_1 = arith.constant 0 : i32
    return %c0_i32, %c0_i32_0 : i32, i32
  }
  func.func @transform_1(%arg0: i32) -> (i32, i32) {
    %c0_i32 = arith.constant 0 : i32
    %c0_i32_0 = arith.constant 0 : i32
    %c0_i32_1 = arith.constant 0 : i32
    return %c0_i32, %c0_i32_0 : i32, i32
  }
  func.func @transform_2(%arg0: i32) -> (i32, i32) {
    %c0_i32 = arith.constant 0 : i32
    %c0_i32_0 = arith.constant 0 : i32
    return %c0_i32, %arg0 : i32, i32
  }
  func.func @transform_3(%arg0: i32) -> (i32, i32) {
    %c0_i32 = arith.constant 0 : i32
    %c0_i32_0 = arith.constant 0 : i32
    return %c0_i32, %arg0 : i32, i32
  }
}

</mosaic_0001>

<llo_original>
// kernel: tile.8
$region0: #{tile.8}
  #allocation0 [shape = 's32[1]{0}', space=sflag, size = 0x4, scoped, tag = 'scoped memory for tile.8']
  %s0 = inlined_call_operand.vmem [shape: f32[4], index: 0, kind: input, shape index: {}]
  %s1 = inlined_call_operand.vmem [shape: f32[4,4], index: 1, kind: output, shape index: {}]
  // Predicated region
  $region2: #{tile.8} parent=0 // pred_check
    _
  $region3: #{tile.8} parent=0 // pred_check_branch
    %3 = sbr.rel (0) target = $region5
  $region4: #{tile.8} parent=0 // pred_region
    _
  $region5: #{tile.8} parent=0 // pred_fallthru
    _
  %v4 = vld [vmem:[%s0] ss:$0 sm:$0xff]
  %5 = vst [vmem:[%s1] sm:$0xf] %v4

// kernel: tile.0
$region0: #{tile.0}
  %s0 = inlined_call_operand.vmem [shape: f32[4,4], index: 0, kind: input, shape index: {}]
  %s1 = inlined_call_operand.vmem [shape: f32[16,1], index: 1, kind: output, shape index: {}]
  $region1: #{tile.0} parent=0
    #allocation0 [shape = 'u8[4096]{0}', space=vmem, size = 0x1000, scoped, tag = 'scoped mem for input reshape']
    %s3 = sshllo.u32 0, 4
    %v4 = vld [vmem:[%s0] sm:%s3]
    %5 = vst [vmem:[#allocation0] sm:%s3] %v4
    %v6 = vld [vmem:[#allocation0] sm:$0xf]
    %vm7 = vcmask 7168
    %8 = vst.msk [vmem:[%s1] ss:$4 sm:$0xf] %vm7, %v6
    %v9 = vld [vmem:[#allocation0] sm:$0xf]
    %10 = vrot.lane.b32.xlu0 %v9, 127
    %v11 = vpop.permute.xlu0 %10
    %vm12 = vcmask 7168
    %s13 = scalar_lea.vmem %s1, 1
    %14 = vst.msk [vmem:[%s13] ss:$4 sm:$0xf] %vm12, %v11
    %v15 = vld [vmem:[#allocation0] sm:$0xf]
    %16 = vrot.lane.b32.xlu0 %v15, 126
    %v17 = vpop.permute.xlu0 %16
    %vm18 = vcmask 7168
    %s19 = scalar_lea.vmem %s1, 2
    %20 = vst.msk [vmem:[%s19] ss:$4 sm:$0xf] %vm18, %v17
    %v21 = vld [vmem:[#allocation0] sm:$0xf]
    %22 = vrot.lane.b32.xlu0 %v21, 125
    %v23 = vpop.permute.xlu0 %22
    %vm24 = vcmask 7168
    %s25 = scalar_lea.vmem %s1, 3
    %26 = vst.msk [vmem:[%s25] ss:$4 sm:$0xf] %vm24, %v23

// kernel: upconv_forward.1
$region0: #{upconv_forward.1}
  #allocation0 [shape = 'u32[]', space=smem, size = 0x4, offset = 0x4, fixed_abs, tag = 'smem constant byte address 0x4 - core index']
  #allocation1 [shape = 'u32[144,128]{1,0:T(1,128)}', space=vmem, size = 0x12000, scoped, tag = 'internal scratch']
  %s0 = inlined_call_operand.vmem [shape: f32[16,4], index: 0, kind: input, shape index: {}]
  %s1 = inlined_call_operand.vmem [shape: f32[16,1], index: 1, kind: input, shape index: {}]
  %s2 = inlined_call_operand.vmem [shape: f32[4,512], index: 2, kind: input, shape index: {}]
  %s3 = inlined_call_operand.vmem [shape: f32[16,512], index: 3, kind: output, shape index: {}]
  %s4 = sld [smem:[#allocation0]]
  $region22: #{upconv_forward.1} parent=0
    _
  %s6 = ssub.s32 1, %s4
  %s7 = scalar_select 0, %s6, %s4
  // Predicated region
  $region2: #{upconv_forward.1} parent=0 // pred_check
    _
  $region3: #{upconv_forward.1} parent=0 // pred_check_branch
    %9 = sbr.rel (0) target = $region5
  $region4: #{upconv_forward.1} parent=0 // pred_region
    _
  $region5: #{upconv_forward.1} parent=0 // pred_fallthru
    _
  // Predicated region
  $region6: #{upconv_forward.1} parent=0 // pred_check
    _
  $region7: #{upconv_forward.1} parent=0 // pred_check_branch
    %11 = sbr.rel (0) target = $region9
  $region8: #{upconv_forward.1} parent=0 // pred_region
    _
  $region9: #{upconv_forward.1} parent=0 // pred_fallthru
    _
  // Predicated region
  $region10: #{upconv_forward.1} parent=0 // pred_check
    _
  $region11: #{upconv_forward.1} parent=0 // pred_check_branch
    %13 = sbr.rel (0) target = $region13
  $region12: #{upconv_forward.1} parent=0 // pred_region
    _
  $region13: #{upconv_forward.1} parent=0 // pred_fallthru
    _
  %v14 = vld [vmem:[%s2] sm:$0xff]
  %v15 = vld [vmem:[%s2 + $0x8] sm:$0xff]
  %v16 = vld [vmem:[%s0] sm:$0xff]
  %v17 = vld [vmem:[%s0 + $0x8] sm:$0xff]
  %19 = vset.pattern.permute.xlu0 0
  %20 = vperm.xlu0 %19, %v16
  %v21 = vpop.permute.xlu0 %20
  %24 = vset.pattern.permute.xlu0 0
  %25 = vperm.xlu0 %24, %v17
  %v26 = vpop.permute.xlu0 %25
  %v30 = vlaneseq
  %v31 = vshrl.u32 %v30, 7
  %v32 = vsub.s32 0, %v31
  %v33 = vrot.slane %v14, %v32
  %v34 = vlaneseq
  %v35 = vshrl.u32 %v34, 7
  %v36 = vsub.s32 4, %v35
  %v37 = vrot.slane %v14, %v36
  %v38 = vlaneseq
  %v39 = vshrl.u32 %v38, 7
  %v40 = vsub.s32 0, %v39
  %v41 = vrot.slane %v15, %v40
  %v42 = vlaneseq
  %v43 = vshrl.u32 %v42, 7
  %v44 = vsub.s32 4, %v43
  %v45 = vrot.slane %v15, %v44
  %v50 = vlaneseq
  %v51 = vshrl.u32 %v50, 7
  %v52 = vsub.s32 0, %v51
  %v53 = vrot.slane %v33, %v52
  %v54 = vlaneseq
  %v55 = vshrl.u32 %v54, 7
  %v56 = vsub.s32 0, %v55
  %v57 = vrot.slane %v37, %v56
  %v58 = vlaneseq
  %v59 = vshrl.u32 %v58, 7
  %v60 = vsub.s32 0, %v59
  %v61 = vrot.slane %v41, %v60
  %v62 = vlaneseq
  %v63 = vshrl.u32 %v62, 7
  %v64 = vsub.s32 0, %v63
  %v65 = vrot.slane %v45, %v64
  %v66 = vmul.f32 %v21, %v53
  %v67 = vmul.f32 %v21, %v57
  %v68 = vmul.f32 %v21, %v61
  %v69 = vmul.f32 %v21, %v65
  %v70 = vmul.f32 %v26, %v53
  %v71 = vmul.f32 %v26, %v57
  %v72 = vmul.f32 %v26, %v61
  %v73 = vmul.f32 %v26, %v65
  %74 = vset.pattern.permute.xlu0 1
  %75 = vperm.xlu0 %74, %v16
  %v76 = vpop.permute.xlu0 %75
  %78 = vset.pattern.permute.xlu0 1
  %79 = vperm.xlu0 %78, %v17
  %v80 = vpop.permute.xlu0 %79
  %v82 = vlaneseq
  %v83 = vshrl.u32 %v82, 7
  %v84 = vsub.s32 1, %v83
  %v85 = vrot.slane %v14, %v84
  %v86 = vlaneseq
  %v87 = vshrl.u32 %v86, 7
  %v88 = vsub.s32 5, %v87
  %v89 = vrot.slane %v14, %v88
  %v90 = vlaneseq
  %v91 = vshrl.u32 %v90, 7
  %v92 = vsub.s32 1, %v91
  %v93 = vrot.slane %v15, %v92
  %v94 = vlaneseq
  %v95 = vshrl.u32 %v94, 7
  %v96 = vsub.s32 5, %v95
  %v97 = vrot.slane %v15, %v96
  %v102 = vlaneseq
  %v103 = vshrl.u32 %v102, 7
  %v104 = vsub.s32 1, %v103
  %v105 = vrot.slane %v85, %v104
  %v106 = vlaneseq
  %v107 = vshrl.u32 %v106, 7
  %v108 = vsub.s32 1, %v107
  %v109 = vrot.slane %v89, %v108
  %v110 = vlaneseq
  %v111 = vshrl.u32 %v110, 7
  %v112 = vsub.s32 1, %v111
  %v113 = vrot.slane %v93, %v112
  %v114 = vlaneseq
  %v115 = vshrl.u32 %v114, 7
  %v116 = vsub.s32 1, %v115
  %v117 = vrot.slane %v97, %v116
  %v118 = vmul.f32 %v76, %v105
  %v119 = vmul.f32 %v76, %v109
  %v120 = vmul.f32 %v76, %v113
  %v121 = vmul.f32 %v76, %v117
  %v122 = vmul.f32 %v80, %v105
  %v123 = vmul.f32 %v80, %v109
  %v124 = vmul.f32 %v80, %v113
  %v125 = vmul.f32 %v80, %v117
  %v126 = vadd.f32 %v66, %v118
  %v127 = vadd.f32 %v67, %v119
  %v128 = vadd.f32 %v68, %v120
  %v129 = vadd.f32 %v69, %v121
  %v130 = vadd.f32 %v70, %v122
  %v131 = vadd.f32 %v71, %v123
  %v132 = vadd.f32 %v72, %v124
  %v133 = vadd.f32 %v73, %v125
  %134 = vset.pattern.permute.xlu0 2
  %135 = vperm.xlu0 %134, %v16
  %v136 = vpop.permute.xlu0 %135
  %138 = vset.pattern.permute.xlu0 2
  %139 = vperm.xlu0 %138, %v17
  %v140 = vpop.permute.xlu0 %139
  %v142 = vlaneseq
  %v143 = vshrl.u32 %v142, 7
  %v144 = vsub.s32 2, %v143
  %v145 = vrot.slane %v14, %v144
  %v146 = vlaneseq
  %v147 = vshrl.u32 %v146, 7
  %v148 = vsub.s32 6, %v147
  %v149 = vrot.slane %v14, %v148
  %v150 = vlaneseq
  %v151 = vshrl.u32 %v150, 7
  %v152 = vsub.s32 2, %v151
  %v153 = vrot.slane %v15, %v152
  %v154 = vlaneseq
  %v155 = vshrl.u32 %v154, 7
  %v156 = vsub.s32 6, %v155
  %v157 = vrot.slane %v15, %v156
  %v162 = vlaneseq
  %v163 = vshrl.u32 %v162, 7
  %v164 = vsub.s32 2, %v163
  %v165 = vrot.slane %v145, %v164
  %v166 = vlaneseq
  %v167 = vshrl.u32 %v166, 7
  %v168 = vsub.s32 2, %v167
  %v169 = vrot.slane %v149, %v168
  %v170 = vlaneseq
  %v171 = vshrl.u32 %v170, 7
  %v172 = vsub.s32 2, %v171
  %v173 = vrot.slane %v153, %v172
  %v174 = vlaneseq
  %v175 = vshrl.u32 %v174, 7
  %v176 = vsub.s32 2, %v175
  %v177 = vrot.slane %v157, %v176
  %v178 = vmul.f32 %v136, %v165
  %v179 = vmul.f32 %v136, %v169
  %v180 = vmul.f32 %v136, %v173
  %v181 = vmul.f32 %v136, %v177
  %v182 = vmul.f32 %v140, %v165
  %v183 = vmul.f32 %v140, %v169
  %v184 = vmul.f32 %v140, %v173
  %v185 = vmul.f32 %v140, %v177
  %v186 = vadd.f32 %v126, %v178
  %v187 = vadd.f32 %v127, %v179
  %v188 = vadd.f32 %v128, %v180
  %v189 = vadd.f32 %v129, %v181
  %v190 = vadd.f32 %v130, %v182
  %v191 = vadd.f32 %v131, %v183
  %v192 = vadd.f32 %v132, %v184
  %v193 = vadd.f32 %v133, %v185
  %194 = vset.pattern.permute.xlu0 3
  %195 = vperm.xlu0 %194, %v16
  %v196 = vpop.permute.xlu0 %195
  %198 = vset.pattern.permute.xlu0 3
  %199 = vperm.xlu0 %198, %v17
  %v200 = vpop.permute.xlu0 %199
  %v202 = vlaneseq
  %v203 = vshrl.u32 %v202, 7
  %v204 = vsub.s32 3, %v203
  %v205 = vrot.slane %v14, %v204
  %v206 = vlaneseq
  %v207 = vshrl.u32 %v206, 7
  %v208 = vsub.s32 7, %v207
  %v209 = vrot.slane %v14, %v208
  %v210 = vlaneseq
  %v211 = vshrl.u32 %v210, 7
  %v212 = vsub.s32 3, %v211
  %v213 = vrot.slane %v15, %v212
  %v214 = vlaneseq
  %v215 = vshrl.u32 %v214, 7
  %v216 = vsub.s32 7, %v215
  %v217 = vrot.slane %v15, %v216
  %v222 = vlaneseq
  %v223 = vshrl.u32 %v222, 7
  %v224 = vsub.s32 3, %v223
  %v225 = vrot.slane %v205, %v224
  %v226 = vlaneseq
  %v227 = vshrl.u32 %v226, 7
  %v228 = vsub.s32 3, %v227
  %v229 = vrot.slane %v209, %v228
  %v230 = vlaneseq
  %v231 = vshrl.u32 %v230, 7
  %v232 = vsub.s32 3, %v231
  %v233 = vrot.slane %v213, %v232
  %v234 = vlaneseq
  %v235 = vshrl.u32 %v234, 7
  %v236 = vsub.s32 3, %v235
  %v237 = vrot.slane %v217, %v236
  %v238 = vmul.f32 %v196, %v225
  %v239 = vmul.f32 %v196, %v229
  %v240 = vmul.f32 %v196, %v233
  %v241 = vmul.f32 %v196, %v237
  %v242 = vmul.f32 %v200, %v225
  %v243 = vmul.f32 %v200, %v229
  %v244 = vmul.f32 %v200, %v233
  %v245 = vmul.f32 %v200, %v237
  %v246 = vadd.f32 %v186, %v238
  %v247 = vadd.f32 %v187, %v239
  %v248 = vadd.f32 %v188, %v240
  %v249 = vadd.f32 %v189, %v241
  %v250 = vadd.f32 %v190, %v242
  %v251 = vadd.f32 %v191, %v243
  %v252 = vadd.f32 %v192, %v244
  %v253 = vadd.f32 %v193, %v245
  %v254 = vld [vmem:[%s1] sm:$0xff]
  %v255 = vld [vmem:[%s1 + $0x8] sm:$0xff]
  %257 = vset.pattern.permute.xlu0 0
  %258 = vperm.xlu0 %257, %v254
  %v259 = vpop.permute.xlu0 %258
  %262 = vset.pattern.permute.xlu0 0
  %263 = vperm.xlu0 %262, %v255
  %v264 = vpop.permute.xlu0 %263
  %v266 = vadd.f32 %v246, %v259
  %v267 = vadd.f32 %v247, %v259
  %v268 = vadd.f32 %v248, %v259
  %v269 = vadd.f32 %v249, %v259
  %v270 = vadd.f32 %v250, %v264
  %v271 = vadd.f32 %v251, %v264
  %v272 = vadd.f32 %v252, %v264
  %v273 = vadd.f32 %v253, %v264
  %274 = vst [vmem:[%s3] sm:$0xff] %v266
  %275 = vst [vmem:[%s3 + $0x8] sm:$0xff] %v267
  %276 = vst [vmem:[%s3 + $0x10] sm:$0xff] %v268
  %277 = vst [vmem:[%s3 + $0x18] sm:$0xff] %v269
  %278 = vst [vmem:[%s3 + $0x20] sm:$0xff] %v270
  %279 = vst [vmem:[%s3 + $0x28] sm:$0xff] %v271
  %280 = vst [vmem:[%s3 + $0x30] sm:$0xff] %v272
  %281 = vst [vmem:[%s3 + $0x38] sm:$0xff] %v273
  // Predicated region
  $region14: #{upconv_forward.1} parent=0 // pred_check
    _
  $region15: #{upconv_forward.1} parent=0 // pred_check_branch
    %283 = sbr.rel (0) target = $region17
  $region16: #{upconv_forward.1} parent=0 // pred_region
    _
  $region17: #{upconv_forward.1} parent=0 // pred_fallthru
    _
  // Predicated region
  $region18: #{upconv_forward.1} parent=0 // pred_check
    _
  $region19: #{upconv_forward.1} parent=0 // pred_check_branch
    %285 = sbr.rel (0) target = $region21
  $region20: #{upconv_forward.1} parent=0 // pred_region
    _
  $region21: #{upconv_forward.1} parent=0 // pred_fallthru
    _

</llo_original>
